<compile_context>
chip_gen: v6e
topology: v6e:2x2x1
jax: 0.10.0
libtpu: 0.0.40
codegen_flags: <defaults>
</compile_context>

<pallas_src>
from functools import partial

import jax
import jax.numpy as jnp
import numpy as np
from jax import lax
from jax.experimental import pallas as pl
from jax.experimental.pallas import tpu as pltpu

CLS_ID = 101
SEP_ID = 102
PAD_ID = 0
VOCAB_SIZE = 30522
MAX_LENGTH = 77          # module default
LANE = 128               # lane-dense sequence width for the kernel
SUBLANE = 8
MAX_B_TILE = 4096        # rows per grid step for large batches (multiple of 8)


def _round_up(x, m):
    return ((x + m - 1) // m) * m


def _tokenize_pad_kernel(slab_ref, ids_ref, mask_ref, *, max_length):
    """Truncate + add special tokens + pad; pure VPU selects, DMA-bound.

    slab_ref : (B_TILE, LANE) int32  lane 0 = #valid wordpiece ids per row,
                                     lanes 1..n = wordpiece ids (pre-shifted
                                     by the CPU producer), rest don't-care.
    ids_ref  : (B_TILE, LANE) int32  BERT input_ids (cols 0..max_length-1 valid)
    mask_ref : (B_TILE, LANE) int32  BERT attention_mask (same valid columns)
    """
    slab = slab_ref[...]
    B, L = slab.shape
    lane = lax.broadcasted_iota(jnp.int32, (B, L), 1)

    # content length after truncation (room for [CLS] and [SEP])
    eff = jnp.minimum(slab_ref[:, 0:1], jnp.int32(max_length - 2))  # (B_TILE,1)

    # lane 0 -> CLS; lanes 1..eff -> tokens; lane eff+1 -> SEP; rest -> PAD.
    # eff + 1 <= max_length - 1 < LANE, so no extra tail mask is needed.
    ids_ref[...] = jnp.where(
        lane == 0, jnp.int32(CLS_ID),
        jnp.where(
            lane <= eff, slab,
            jnp.where(lane == eff + 1, jnp.int32(SEP_ID), jnp.int32(PAD_ID)),
        ),
    )
    mask_ref[...] = (lane <= eff + 1).astype(jnp.int32)


def make_token_slab(raw_ids, lengths, max_length=MAX_LENGTH):
    """CPU-side producer stand-in (in reality part of the wordpiece tokenizer).

    Builds the lane-dense (B, 128) int32 slab the kernel consumes:
      lane 0               : number of valid wordpiece ids
      lanes 1..ncopy       : wordpiece ids (only the first max_length-2 matter)
      remaining lanes      : zero (don't-care)
    """
    raw_ids = np.asarray(raw_ids, np.int32)
    lengths = np.asarray(lengths, np.int32)
    B, L_raw = raw_ids.shape
    ncopy = min(L_raw, max_length - 2)
    slab = np.zeros((B, LANE), np.int32)
    slab[:, 0] = np.minimum(lengths, L_raw)
    slab[:, 1:1 + ncopy] = raw_ids[:, :ncopy]
    return slab


def bert_tokenize_pad(token_slab, max_length=MAX_LENGTH):
    """token_slab: (B, 128) int32 from make_token_slab (or the real producer).

    Returns (input_ids, attention_mask), each a lane-dense (B_pad, 128) int32
    slab whose columns 0..max_length-1 match
    BertTokenizerFast(..., truncation=True, padding='max_length').
    Downstream consumers should index columns directly instead of narrowing
    (the 128->77 strided copy costs as much HBM traffic as the kernel itself).
    """
    slab = jnp.asarray(token_slab, jnp.int32)
    B, L = slab.shape
    assert L == LANE, f"expected lane-dense ({LANE}-wide) slab, got {L}"
    assert 3 <= max_length <= LANE

    # batch tiling: small batches -> one tile; large batches -> MAX_B_TILE rows
    # per grid step (double-buffered, VMEM-bounded, megacore-parallel on v7x).
    b_small = _round_up(max(B, 1), SUBLANE)
    B_TILE = b_small if b_small <= MAX_B_TILE else MAX_B_TILE
    B_pad = _round_up(max(B, 1), B_TILE)
    if B_pad != B:
        # Padded rows get length 0 -> harmless [CLS][SEP][PAD]* output.
        slab = jnp.pad(slab, ((0, B_pad - B), (0, 0)))

    grid = (B_pad // B_TILE,)
    ids, mask = pl.pallas_call(
        partial(_tokenize_pad_kernel, max_length=max_length),
        out_shape=(jax.ShapeDtypeStruct((B_pad, LANE), jnp.int32),
                   jax.ShapeDtypeStruct((B_pad, LANE), jnp.int32)),
        grid=grid,
        in_specs=[pl.BlockSpec((B_TILE, LANE), lambda i: (i, 0))],
        out_specs=(pl.BlockSpec((B_TILE, LANE), lambda i: (i, 0)),
                   pl.BlockSpec((B_TILE, LANE), lambda i: (i, 0))),
        input_output_aliases={0: 0},
        compiler_params=pltpu.CompilerParams(
            dimension_semantics=("parallel",)),
    )(slab)
    return ids, mask


def _reference(raw_ids, lengths, max_length=MAX_LENGTH):
    """Pure-numpy reference of BERT truncate/pad semantics."""
    raw_ids = np.asarray(raw_ids)
    B, L_raw = raw_ids.shape
    ids = np.full((B, max_length), PAD_ID, np.int32)
    mask = np.zeros((B, max_length), np.int32)
    for b in range(B):
        n = min(int(lengths[b]), L_raw, max_length - 2)
        ids[b, 0] = CLS_ID
        ids[b, 1:1 + n] = raw_ids[b, :n]
        ids[b, 1 + n] = SEP_ID
        mask[b, :n + 2] = 1
    return ids, mask


if __name__ == "__main__":
    key = jax.random.PRNGKey(0)
    B, L_RAW = 2, 100
    # deterministic pseudo wordpiece ids (stand-in for the string tokenizer)
    k_ids, _ = jax.random.split(key)
    raw_ids = jax.random.randint(k_ids, (B, L_RAW), 1000, VOCAB_SIZE,
                                 dtype=jnp.int32)
    lengths = jnp.array([5, 100], dtype=jnp.int32)  # 2nd row forces truncation

    # CPU producer: lane-dense slab with lengths folded into lane 0.
    slab = make_token_slab(np.asarray(raw_ids), np.asarray(lengths))

    ids, mask = bert_tokenize_pad(slab)
    ids, mask = jax.block_until_ready((ids, mask))

    ref_ids, ref_mask = _reference(np.asarray(raw_ids), np.asarray(lengths))
    B_pad = _round_up(B, SUBLANE)
    assert ids.shape == (B_pad, LANE) and mask.shape == (B_pad, LANE)
    assert ids.dtype == jnp.int32 and mask.dtype == jnp.int32
    # host-side view of the first max_length columns (no device-side narrowing)
    np.testing.assert_array_equal(np.asarray(ids)[:B, :MAX_LENGTH], ref_ids)
    np.testing.assert_array_equal(np.asarray(mask)[:B, :MAX_LENGTH], ref_mask)
    # padded tail columns must be PAD / 0
    assert np.all(np.asarray(ids)[:B, MAX_LENGTH:] == PAD_ID)
    assert np.all(np.asarray(mask)[:B, MAX_LENGTH:] == 0)
    print("KERNEL_OK")
</pallas_src>

<mosaic_0001>
module attributes {stable_mosaic.version = 11 : i64} {
  func.func @_tokenize_pad_kernel(%arg0: i32, %arg1: memref<8x128xi32, #tpu.memory_space<vmem>>, %arg2: memref<8x128xi32, #tpu.memory_space<vmem>>, %arg3: memref<8x128xi32, #tpu.memory_space<vmem>>) attributes {dimension_semantics = [#tpu.dimension_semantics<parallel>], iteration_bounds = array<i64: 1>, scalar_prefetch = 0 : i64, scratch_operands = 0 : i64, tpu.core_type = #tpu.core_type<tc>, window_params = [{transform_indices = @transform_0, window_bounds = array<i64: 8, 128>}, {transform_indices = @transform_1, window_bounds = array<i64: 8, 128>}, {transform_indices = @transform_2, window_bounds = array<i64: 8, 128>}]} {
    %c0 = arith.constant 0 : index
    %c0_0 = arith.constant 0 : index
    %0 = vector.load %arg1[%c0, %c0_0] : memref<8x128xi32, #tpu.memory_space<vmem>>, vector<8x128xi32>
    %1 = tpu.iota {dimensions = array<i32: 1>} : vector<8x128xi32>
    %c0_1 = arith.constant 0 : index
    %c0_2 = arith.constant 0 : index
    %2 = vector.load %arg1[%c0_1, %c0_2] : memref<8x128xi32, #tpu.memory_space<vmem>>, vector<8x1xi32>
    %c75_i32 = arith.constant 75 : i32
    %3 = vector.broadcast %c75_i32 : i32 to vector<8x1xi32>
    %4 = arith.minsi %2, %3 : vector<8x1xi32>
    %c0_i32 = arith.constant 0 : i32
    %5 = vector.broadcast %c0_i32 : i32 to vector<8x128xi32>
    %6 = arith.cmpi eq, %1, %5 : vector<8x128xi32>
    %7 = vector.broadcast %4 : vector<8x1xi32> to vector<8x128xi32>
    %8 = arith.cmpi sle, %1, %7 : vector<8x128xi32>
    %c1_i32 = arith.constant 1 : i32
    %9 = vector.broadcast %c1_i32 : i32 to vector<8x1xi32>
    %10 = arith.addi %4, %9 : vector<8x1xi32>
    %11 = vector.broadcast %10 : vector<8x1xi32> to vector<8x128xi32>
    %12 = arith.cmpi eq, %1, %11 : vector<8x128xi32>
    %c102_i32 = arith.constant 102 : i32
    %c0_i32_3 = arith.constant 0 : i32
    %13 = vector.broadcast %c102_i32 : i32 to vector<8x128xi32>
    %14 = vector.broadcast %c0_i32_3 : i32 to vector<8x128xi32>
    %15 = arith.select %12, %13, %14 : vector<8x128xi1>, vector<8x128xi32>
    %16 = arith.select %8, %0, %15 : vector<8x128xi1>, vector<8x128xi32>
    %c101_i32 = arith.constant 101 : i32
    %17 = vector.broadcast %c101_i32 : i32 to vector<8x128xi32>
    %18 = arith.select %6, %17, %16 : vector<8x128xi1>, vector<8x128xi32>
    %c0_4 = arith.constant 0 : index
    %c0_5 = arith.constant 0 : index
    %19 = vector.load %arg2[%c0_4, %c0_5] : memref<8x128xi32, #tpu.memory_space<vmem>>, vector<8x128xi32>
    tpu.vector_store %arg2[%c0_4, %c0_5], %18 {strides = array<i32>} : memref<8x128xi32, #tpu.memory_space<vmem>>, vector<8x128xi32>,
    %c1_i32_6 = arith.constant 1 : i32
    %20 = vector.broadcast %c1_i32_6 : i32 to vector<8x1xi32>
    %21 = arith.addi %4, %20 : vector<8x1xi32>
    %22 = vector.broadcast %21 : vector<8x1xi32> to vector<8x128xi32>
    %23 = arith.cmpi sle, %1, %22 : vector<8x128xi32>
    %24 = arith.extui %23 : vector<8x128xi1> to vector<8x128xi32>
    %c0_7 = arith.constant 0 : index
    %c0_8 = arith.constant 0 : index
    %25 = vector.load %arg3[%c0_7, %c0_8] : memref<8x128xi32, #tpu.memory_space<vmem>>, vector<8x128xi32>
    tpu.vector_store %arg3[%c0_7, %c0_8], %24 {strides = array<i32>} : memref<8x128xi32, #tpu.memory_space<vmem>>, vector<8x128xi32>,
    return
  }
  func.func @transform_0(%arg0: i32) -> (i32, i32) {
    %c0_i32 = arith.constant 0 : i32
    %c0_i32_0 = arith.constant 0 : i32
    return %arg0, %c0_i32 : i32, i32
  }
  func.func @transform_1(%arg0: i32) -> (i32, i32) {
    %c0_i32 = arith.constant 0 : i32
    %c0_i32_0 = arith.constant 0 : i32
    return %arg0, %c0_i32 : i32, i32
  }
  func.func @transform_2(%arg0: i32) -> (i32, i32) {
    %c0_i32 = arith.constant 0 : i32
    %c0_i32_0 = arith.constant 0 : i32
    return %arg0, %c0_i32 : i32, i32
  }
}

</mosaic_0001>

<llo_original>
// kernel: tpu_custom_call.1
$region0: #{tpu_custom_call.1}
  #allocation0 [shape = 'u32[]', space=smem, size = 0x4, offset = 0x4, fixed_abs, tag = 'smem constant byte address 0x4 - core index']
  #allocation1 [shape = 'u32[144,128]{1,0:T(1,128)}', space=vmem, size = 0x12000, scoped, tag = 'internal scratch']
  %s0 = inlined_call_operand.hbm [shape: s32[8,128], index: 0, kind: input, shape index: {}, may-alias: {0,1}]
  %s1 = inlined_call_operand.hbm [shape: s32[8,128], index: 1, kind: output, shape index: {0}, may-alias: {0,1}]
  %s2 = inlined_call_operand.hbm [shape: s32[8,128], index: 2, kind: output, shape index: {1}]
  %3 = xla_tuple %s1, %s2
  %s4 = sld [smem:[#allocation0]]
  $region26: #{tpu_custom_call.1} parent=0
    _
  %s6 = ssub.s32 1, %s4
  %s7 = scalar_select 0, %s6, %s4
  $region1: #{tpu_custom_call.1} parent=0
    #allocation2 [shape = 'u8[4096]{0}', space=vmem, size = 0x1000, scoped, tag = 'input window, operand 0, single buffered']
    #allocation3 [shape = 's32[1]{0}', space=sflag, size = 0x4, scoped, tag = 'scoped memory for tpu_custom_call.1']
    #allocation4 [shape = 's32[1]{0}', space=sflag, size = 0x4, scoped, tag = 'scoped memory for tpu_custom_call.1']
    #allocation5 [shape = 'u8[4096]{0}', space=vmem, size = 0x1000, scoped, tag = 'output window, operand 0, single buffered']
    #allocation6 [shape = 'u8[4096]{0}', space=vmem, size = 0x1000, scoped, tag = 'output window, operand 1, single buffered']
    #allocation7 [shape = 's32[1]{0}', space=sflag, size = 0x4, scoped, tag = 'scoped memory for tpu_custom_call.1']
    %8 = vsyncpa [#allocation3], 0
    %9 = vsyncpa [#allocation4], 0
    %10 = vsyncpa [#allocation7], 0
    // Predicated region
    $region2: #{tpu_custom_call.1} parent=1 // pred_check
      _
    $region3: #{tpu_custom_call.1} parent=1 // pred_check_branch
      %12 = sbr.rel (0) target = $region5
    $region4: #{tpu_custom_call.1} parent=1 // pred_region
      %s14 = ssub.s32 128, 128
      %15 = vsyncadd [#allocation3], %s14
      %s17 = sshll.u32 [#allocation2], 4
      %s18 = int_to_ptr.vmem [resolvable:$true] %s17
      %20 = dma.hbm_to_vmem [thread:$0]  %s0, 128, %s18, [#allocation3]
    $region5: #{tpu_custom_call.1} parent=1 // pred_fallthru
      _
    // Predicated region
    $region6: #{tpu_custom_call.1} parent=1 // pred_check
      _
    $region7: #{tpu_custom_call.1} parent=1 // pred_check_branch
      %22 = sbr.rel (0) target = $region9
    $region8: #{tpu_custom_call.1} parent=1 // pred_region
      %23 = dma.done [#allocation3], 128
    $region9: #{tpu_custom_call.1} parent=1 // pred_fallthru
      _
    %v24 = vld [vmem:[#allocation2] sm:$0xff]
    %v25 = vlaneseq
    %v26 = vand.u32 %v25, 127
    %vm27 = vcmp.lt.s32.totalorder %v24, 75
    %v28 = vsel %vm27, %v24, 75
    %vm29 = vcmp.eq.s32.totalorder %v26, 0
    %30 = vset.pattern.permute.xlu0 0
    %31 = vperm.xlu0 %30, %v28
    %v32 = vpop.permute.xlu0 %31
    %vm33 = vcmp.le.s32.totalorder %v26, %v32
    %v34 = vadd.s32 %v28, 1
    %35 = vset.pattern.permute.xlu0 0
    %36 = vperm.xlu0 %35, %v34
    %v37 = vpop.permute.xlu0 %36
    %vm38 = vcmp.eq.s32.totalorder %v26, %v37
    %v39 = vsel %vm38, 102, 0
    %v40 = vsel %vm33, %v24, %v39
    %v41 = vsel %vm29, 101, %v40
    %42 = vst [vmem:[#allocation5] sm:$0xff] %v41
    %vm43 = vcmp.le.s32.totalorder %v26, %v37
    %v44 = vsel %vm43, 1, 0
    %45 = vst [vmem:[#allocation6] sm:$0xff] %v44
    // Predicated region
    $region10: #{tpu_custom_call.1} parent=1 // pred_check
      _
    $region11: #{tpu_custom_call.1} parent=1 // pred_check_branch
      %47 = sbr.rel (0) target = $region13
    $region12: #{tpu_custom_call.1} parent=1 // pred_region
      %s49 = ssub.s32 128, 128
      %50 = vsyncadd [#allocation4], %s49
      %s52 = sshll.u32 [#allocation5], 4
      %s53 = int_to_ptr.vmem [resolvable:$true] %s52
      %55 = dma.vmem_to_hbm [thread:$0]  %s53, 128, %s1, [#allocation4]
    $region13: #{tpu_custom_call.1} parent=1 // pred_fallthru
      _
    // Predicated region
    $region14: #{tpu_custom_call.1} parent=1 // pred_check
      _
    $region15: #{tpu_custom_call.1} parent=1 // pred_check_branch
      %57 = sbr.rel (0) target = $region17
    $region16: #{tpu_custom_call.1} parent=1 // pred_region
      %s59 = ssub.s32 128, 128
      %60 = vsyncadd [#allocation7], %s59
      %s62 = sshll.u32 [#allocation6], 4
      %s63 = int_to_ptr.vmem [resolvable:$true] %s62
      %65 = dma.vmem_to_hbm [thread:$0]  %s63, 128, %s2, [#allocation7]
    $region17: #{tpu_custom_call.1} parent=1 // pred_fallthru
      _
    // Predicated region
    $region18: #{tpu_custom_call.1} parent=1 // pred_check
      _
    $region19: #{tpu_custom_call.1} parent=1 // pred_check_branch
      %67 = sbr.rel (0) target = $region21
    $region20: #{tpu_custom_call.1} parent=1 // pred_region
      %68 = dma.done [#allocation4], 128
    $region21: #{tpu_custom_call.1} parent=1 // pred_fallthru
      _
    // Predicated region
    $region22: #{tpu_custom_call.1} parent=1 // pred_check
      _
    $region23: #{tpu_custom_call.1} parent=1 // pred_check_branch
      %70 = sbr.rel (0) target = $region25
    $region24: #{tpu_custom_call.1} parent=1 // pred_region
      %71 = dma.done [#allocation7], 128
    $region25: #{tpu_custom_call.1} parent=1 // pred_fallthru
      _
    %72 = vsyncpa [#allocation3], 1
    %73 = vsyncpa [#allocation4], 1
    %74 = vsyncpa [#allocation7], 1

</llo_original>
